<compile_context>
chip_gen: v7x
topology: tpu7x:2x2x1
jax: 0.10.0
libtpu: 0.0.40
codegen_flags: <defaults>
</compile_context>

<pallas_src>
import functools

import jax
import jax.numpy as jnp
from jax.experimental import pallas as pl
from jax.experimental.pallas import tpu as pltpu


# Explicit scoped-VMEM budget: large enough for 16-32 row tiles with full
# double-buffering at production VAE shapes, small enough for v7x (64 MiB
# physical per TensorCore).  Raise to ~96 MiB on v5e/v6e when sweeping bigger
# row tiles.
VMEM_LIMIT_BYTES = 48 * 1024 * 1024


def _cparams(*dimension_semantics):
    return pltpu.CompilerParams(
        dimension_semantics=dimension_semantics,
        vmem_limit_bytes=VMEM_LIMIT_BYTES)


# --------------------------- GroupNorm statistics ----------------------------


def gn_stats_kernel(x_ref, sum_ref, ssq_ref):
    """Per-(batch, row-tile) partial sum / sum-of-squares; C stays on lanes."""
    x = x_ref[0].astype(jnp.float32)                               # (TH, W, C)
    s = jnp.sum(jnp.sum(x, axis=0), axis=0, keepdims=True)         # (1, C)
    q = jnp.sum(jnp.sum(x * x, axis=0), axis=0, keepdims=True)     # (1, C)
    sum_ref[0, 0] = s
    ssq_ref[0, 0] = q


def gn_partial_stats(x, row_tile):
    """Standalone stats pass (only needed for the very first norm1 input)."""
    B, H, W, C = x.shape
    TH = min(row_tile, H)
    assert H % TH == 0
    nt = H // TH
    return pl.pallas_call(
        gn_stats_kernel,
        out_shape=(jax.ShapeDtypeStruct((B, nt, 1, C), jnp.float32),
                   jax.ShapeDtypeStruct((B, nt, 1, C), jnp.float32)),
        grid=(B, nt),
        in_specs=[pl.BlockSpec((1, TH, W, C), lambda bi, ti: (bi, ti, 0, 0))],
        out_specs=(pl.BlockSpec((1, 1, 1, C), lambda bi, ti: (bi, ti, 0, 0)),
                   pl.BlockSpec((1, 1, 1, C), lambda bi, ti: (bi, ti, 0, 0))),
        compiler_params=_cparams("parallel", "parallel"),
    )(x)


def gn_scale_shift(sum_part, ssq_part, gamma, beta, groups, eps, n_spatial):
    """Fold per-tile partials into per-channel GN (scale, shift): (B, 1, C)."""
    s = sum_part.sum(axis=(1, 2))                 # (B, C) f32
    q = ssq_part.sum(axis=(1, 2))
    B, C = s.shape
    cg = C // groups
    n = float(n_spatial * cg)
    sg = s.reshape(B, groups, cg).sum(-1)
    qg = q.reshape(B, groups, cg).sum(-1)
    mean = sg / n
    # E[x^2]-E[x]^2 in f32 with a clamp (torch GN uses biased variance).
    var = jnp.maximum(qg / n - mean * mean, 0.0)
    rstd = jax.lax.rsqrt(var + eps)
    scale = gamma[None, :] * jnp.repeat(rstd, cg, axis=-1)
    shift = beta[None, :] - jnp.repeat(mean, cg, axis=-1) * scale
    return scale.reshape(B, 1, C), shift.reshape(B, 1, C)


# ------------------- fused GroupNorm+SiLU + 3x3 'same' conv -------------------


def gn_silu_conv3_kernel(x_ref, top_ref, bot_ref, scale_ref, shift_ref,
                         w_ref, b_ref, *rest, residual_mode):
    """One (1, TH, W, Cin) row tile: GN-affine + SiLU, then a 3x3 'same' conv
    as 9 accumulating bf16 MXU matmuls (no im2col materialization).  Halo rows
    arrive as 1-row blocks.  Also emits the *next* GroupNorm's per-tile stats.

    residual_mode: 0 = none, 1 = add residual tile, 2 = 1x1-conv residual + add."""
    if residual_mode == 0:
        o_ref, sum_ref, ssq_ref = rest
    elif residual_mode == 1:
        res_ref, o_ref, sum_ref, ssq_ref = rest
    else:
        res_ref, idw_ref, idb_ref, o_ref, sum_ref, ssq_ref = rest

    TH, W, Cin = x_ref.shape[1], x_ref.shape[2], x_ref.shape[3]
    Cout = o_ref.shape[3]
    t, nt = pl.program_id(1), pl.num_programs(1)

    scale = scale_ref[...]                      # (1, 1, Cin) f32
    shift = shift_ref[...]

    def gn_silu(v):                             # f32 VPU/EUP math (v5e: no bf16 VPU)
        y = v.astype(jnp.float32) * scale + shift
        return y * jax.nn.sigmoid(y)

    xm = gn_silu(x_ref[0])                                          # (TH, W, Cin)
    # 'same' padding applies to the *activated* signal -> zero boundary halos.
    xt = gn_silu(top_ref[0]) * jnp.where(t == 0, 0.0, 1.0)          # (1, W, Cin)
    xb = gn_silu(bot_ref[0]) * jnp.where(t == nt - 1, 0.0, 1.0)     # (1, W, Cin)

    # Three staging buffers only (row-extended, left-shifted, right-shifted);
    # the unaligned sublane concats stay f32, MXU operands are cast to bf16.
    rows = jnp.concatenate([xt, xm, xb], axis=0)                    # (TH+2, W, Cin)
    zcol = jnp.zeros((TH + 2, 1, Cin), jnp.float32)
    left = jnp.concatenate([zcol, rows[:, :W - 1, :]], axis=1)      # col x-1 (kx=0)
    right = jnp.concatenate([rows[:, 1:, :], zcol], axis=1)         # col x+1 (kx=2)
    srcs = (left.astype(jnp.bfloat16),
            rows.astype(jnp.bfloat16),
            right.astype(jnp.bfloat16))

    # 9 accumulating per-tap matmuls over cheap leading-dim slices.
    acc = jnp.zeros((TH * W, Cout), jnp.float32)
    for ky in range(3):
        for kx in range(3):
            tap = srcs[kx][ky:ky + TH].reshape(TH * W, Cin)
            acc += jax.lax.dot_general(tap, w_ref[ky * 3 + kx],
                                       (((1,), (0,)), ((), ())),
                                       preferred_element_type=jnp.float32)
    acc = acc + b_ref[...]                                          # (1, Cout)

    if residual_mode == 1:
        acc = acc + res_ref[0].reshape(TH * W, Cout).astype(jnp.float32)
    elif residual_mode == 2:
        r = res_ref[0].reshape(TH * W, res_ref.shape[3])            # bf16
        acc = acc + jax.lax.dot_general(r, idw_ref[...],
                                        (((1,), (0,)), ((), ())),
                                        preferred_element_type=jnp.float32)
        acc = acc + idb_ref[...]

    # Fused next-GroupNorm statistics from the f32 accumulator (saves re-reading
    # this activation from HBM for the following norm).
    sum_ref[0, 0] = jnp.sum(acc, axis=0, keepdims=True)             # (1, Cout)
    ssq_ref[0, 0] = jnp.sum(acc * acc, axis=0, keepdims=True)

    o_ref[0] = acc.reshape(TH, W, Cout).astype(o_ref.dtype)


def gn_silu_conv3(x, scale, shift, w_hwio, b, *, row_tile,
                  residual=None, id_w=None, id_b=None):
    """Fused GN+SiLU + 3x3 'same' conv (+ optional fused residual / 1x1 conv).
    Returns (y_bf16, per-tile sum, per-tile sum-of-squares)."""
    B, H, W, Cin = x.shape
    K, Cout = w_hwio.shape[0], w_hwio.shape[-1]
    assert K == 3
    TH = min(row_tile, H)
    assert H % TH == 0
    nt = H // TH
    w_taps = w_hwio.reshape(K * K, Cin, Cout).astype(jnp.bfloat16)

    # NOTE: grid-invariant operands (weights/bias/scale/shift) still use plain
    # BlockSpecs; single-buffering them (pl.Buffered(1)) is a further VMEM
    # saving on v7x once supported end-to-end for the top-level pipeline.
    in_specs = [
        pl.BlockSpec((1, TH, W, Cin), lambda bi, ti: (bi, ti, 0, 0)),
        # 1-row halos (block index == row index because the H block size is 1).
        pl.BlockSpec((1, 1, W, Cin),
                     lambda bi, ti: (bi, jnp.maximum(ti * TH - 1, 0), 0, 0)),
        pl.BlockSpec((1, 1, W, Cin),
                     lambda bi, ti: (bi, jnp.minimum(ti * TH + TH, H - 1), 0, 0)),
        pl.BlockSpec((1, 1, Cin), lambda bi, ti: (bi, 0, 0)),
        pl.BlockSpec((1, 1, Cin), lambda bi, ti: (bi, 0, 0)),
        pl.BlockSpec((K * K, Cin, Cout), lambda bi, ti: (0, 0, 0)),
        pl.BlockSpec((1, Cout), lambda bi, ti: (0, 0)),
    ]
    args = [x, x, x, scale, shift, w_taps, b.reshape(1, Cout)]

    mode = 0
    if residual is not None:
        Cres = residual.shape[-1]
        in_specs.append(pl.BlockSpec((1, TH, W, Cres),
                                     lambda bi, ti: (bi, ti, 0, 0)))
        args.append(residual)
        if id_w is not None:
            mode = 2
            in_specs += [pl.BlockSpec((Cres, Cout), lambda bi, ti: (0, 0)),
                         pl.BlockSpec((1, Cout), lambda bi, ti: (0, 0))]
            args += [id_w.reshape(Cres, Cout).astype(jnp.bfloat16),
                     id_b.reshape(1, Cout)]
        else:
            mode = 1

    kernel = functools.partial(gn_silu_conv3_kernel, residual_mode=mode)
    y, s, q = pl.pallas_call(
        kernel,
        out_shape=(jax.ShapeDtypeStruct((B, H, W, Cout), jnp.bfloat16),
                   jax.ShapeDtypeStruct((B, nt, 1, Cout), jnp.float32),
                   jax.ShapeDtypeStruct((B, nt, 1, Cout), jnp.float32)),
        grid=(B, nt),
        in_specs=in_specs,
        out_specs=(pl.BlockSpec((1, TH, W, Cout), lambda bi, ti: (bi, ti, 0, 0)),
                   pl.BlockSpec((1, 1, 1, Cout), lambda bi, ti: (bi, ti, 0, 0)),
                   pl.BlockSpec((1, 1, 1, Cout), lambda bi, ti: (bi, ti, 0, 0))),
        compiler_params=_cparams("parallel", "parallel"),
    )(*args)
    return y, s, q


# --------------------- stride-2 downsample conv (3x3, pad 1) ------------------


def downsample_conv3_kernel(xe_ref, xo_ref, top_ref, w_ref, b_ref, o_ref):
    """3x3 / stride-2 / pad-1 conv on one output row tile.  Inputs arrive via a
    free (B, Ho, 2, Wo, 2*Cin) even/odd parity view of the NHWC tensor, so the
    stride is handled with contiguous slices only.  9 accumulating bf16 MXU
    matmuls; no im2col materialization."""
    THo, Wo, Cout = o_ref.shape[1], o_ref.shape[2], o_ref.shape[3]
    Cin = xe_ref.shape[-1] // 2
    t = pl.program_id(1)

    even = xe_ref[...].reshape(THo, Wo, 2 * Cin).astype(jnp.float32)  # rows 2i
    odd = xo_ref[...].reshape(THo, Wo, 2 * Cin).astype(jnp.float32)   # rows 2i+1
    top = top_ref[...].reshape(1, Wo, 2 * Cin).astype(jnp.float32)    # row 2i-1 @ i=0
    top = top * jnp.where(t == 0, 0.0, 1.0)                           # top zero pad

    # Row sources for ky = 0, 1, 2  (original rows 2i-1, 2i, 2i+1).
    if THo > 1:
        r0 = jnp.concatenate([top, odd[:THo - 1]], axis=0)
    else:
        r0 = top
    row_srcs = (r0, even, odd)

    zc = jnp.zeros((THo, 1, Cin), jnp.float32)
    acc = jnp.zeros((THo * Wo, Cout), jnp.float32)
    for ky, R in enumerate(row_srcs):
        ev = R[:, :, :Cin]                                     # cols 2j    (kx=1)
        od = R[:, :, Cin:]                                     # cols 2j+1  (kx=2)
        om = jnp.concatenate([zc, od[:, :Wo - 1, :]], axis=1)  # cols 2j-1  (kx=0)
        for kx, T in enumerate((om, ev, od)):
            tap = T.reshape(THo * Wo, Cin).astype(jnp.bfloat16)
            acc += jax.lax.dot_general(tap, w_ref[ky * 3 + kx],
                                       (((1,), (0,)), ((), ())),
                                       preferred_element_type=jnp.float32)
    acc = acc + b_ref[...]
    o_ref[0] = acc.reshape(THo, Wo, Cout)


def downsample_conv3(x, w_hwio, b, *, row_tile):
    B, H, W, Cin = x.shape
    K, Cout = w_hwio.shape[0], w_hwio.shape[-1]
    assert K == 3 and H % 2 == 0 and W % 2 == 0
    Ho, Wo = H // 2, W // 2
    THo = min(max(row_tile // 2, 1), Ho)
    assert Ho % THo == 0
    nt = Ho // THo
    w_taps = w_hwio.reshape(K * K, Cin, Cout).astype(jnp.bfloat16)
    xr = x.reshape(B, Ho, 2, Wo, 2 * Cin)        # free row/col parity view

    return pl.pallas_call(
        downsample_conv3_kernel,
        out_shape=jax.ShapeDtypeStruct((B, Ho, Wo, Cout), jnp.float32),
        grid=(B, nt),
        in_specs=[
            pl.BlockSpec((1, THo, 1, Wo, 2 * Cin),
                         lambda bi, ti: (bi, ti, 0, 0, 0)),      # even rows 2i
            pl.BlockSpec((1, THo, 1, Wo, 2 * Cin),
                         lambda bi, ti: (bi, ti, 1, 0, 0)),      # odd rows 2i+1
            pl.BlockSpec((1, 1, 1, Wo, 2 * Cin),                 # halo row 2i-1
                         lambda bi, ti: (bi, jnp.maximum(ti * THo - 1, 0), 1, 0, 0)),
            pl.BlockSpec((K * K, Cin, Cout), lambda bi, ti: (0, 0, 0)),
            pl.BlockSpec((1, Cout), lambda bi, ti: (0, 0)),
        ],
        out_specs=pl.BlockSpec((1, THo, Wo, Cout), lambda bi, ti: (bi, ti, 0, 0)),
        compiler_params=_cparams("parallel", "parallel"),
    )(xr, xr, xr, w_taps, b.reshape(1, Cout))


# ------------------------------ module forward --------------------------------


def encoder_block_2d(x_nchw, params, groups, eps=1e-6, row_tile=16):
    """EncoderBlock2D forward: NCHW in -> NCHW out with spatial dims halved.

    Inter-kernel activations are bf16; each conv kernel also emits the stats
    needed by the following GroupNorm, so only the block input needs a
    standalone stats pass.  For v7x with B==1, pick row_tile so the number of
    row tiles is even (both TensorCores stay busy)."""
    x = jnp.transpose(x_nchw, (0, 2, 3, 1)).astype(jnp.bfloat16)   # -> NHWC bf16
    B, H, W, _ = x.shape
    s, q = gn_partial_stats(x, row_tile)                           # first norm1 stats
    for p in params["blocks"]:
        res = x
        sc1, sh1 = gn_scale_shift(s, q, p["norm1_gamma"], p["norm1_beta"],
                                  groups, eps, H * W)
        h, hs, hq = gn_silu_conv3(x, sc1, sh1, p["conv1_w"], p["conv1_b"],
                                  row_tile=row_tile)
        sc2, sh2 = gn_scale_shift(hs, hq, p["norm2_gamma"], p["norm2_beta"],
                                  groups, eps, H * W)
        # time_embed / class conditioning are disabled for EncoderBlock2D.
        # TODO(synk): dropout is identity here (dropout_p=0.0 / eval mode).
        x, s, q = gn_silu_conv3(h, sc2, sh2, p["conv2_w"], p["conv2_b"],
                                row_tile=row_tile, residual=res,
                                id_w=p.get("id_w"), id_b=p.get("id_b"))
    x = downsample_conv3(x, params["down_w"], params["down_b"],
                         row_tile=row_tile)
    return jnp.transpose(x, (0, 3, 1, 2))                          # -> NCHW


# ------------------------------ parameter init ---------------------------------


def init_params(key, in_channels, out_channels, num_blocks, down_kernel=3):
    def conv_w(k, ksz, cin, cout):
        return (jax.random.normal(k, (ksz, ksz, cin, cout), jnp.float32)
                * (0.1 / (ksz * ksz * cin) ** 0.5))

    keys = iter(jax.random.split(key, 12 * num_blocks + 4))
    blocks = []
    for i in range(num_blocks):
        cin = in_channels if i == 0 else out_channels
        bp = {
            "norm1_gamma": 1.0 + 0.1 * jax.random.normal(next(keys), (cin,)),
            "norm1_beta": 0.1 * jax.random.normal(next(keys), (cin,)),
            "conv1_w": conv_w(next(keys), 3, cin, out_channels),
            "conv1_b": 0.01 * jax.random.normal(next(keys), (out_channels,)),
            "norm2_gamma": 1.0 + 0.1 * jax.random.normal(next(keys), (out_channels,)),
            "norm2_beta": 0.1 * jax.random.normal(next(keys), (out_channels,)),
            "conv2_w": conv_w(next(keys), 3, out_channels, out_channels),
            "conv2_b": 0.01 * jax.random.normal(next(keys), (out_channels,)),
        }
        if cin != out_channels:
            bp["id_w"] = conv_w(next(keys), 1, cin, out_channels)
            bp["id_b"] = 0.01 * jax.random.normal(next(keys), (out_channels,))
        blocks.append(bp)
    return {
        "blocks": blocks,
        "down_w": conv_w(next(keys), down_kernel, out_channels, out_channels),
        "down_b": 0.01 * jax.random.normal(next(keys), (out_channels,)),
    }


# ------------------------------ pure-JAX reference ------------------------------


def _ref_gn_silu(x, gamma, beta, groups, eps):
    B, H, W, C = x.shape
    xr = x.reshape(B, H, W, groups, C // groups)
    mean = xr.mean(axis=(1, 2, 4), keepdims=True)
    var = ((xr - mean) ** 2).mean(axis=(1, 2, 4), keepdims=True)
    xn = ((xr - mean) / jnp.sqrt(var + eps)).reshape(B, H, W, C)
    y = xn * gamma + beta
    return y * jax.nn.sigmoid(y)


def _ref_conv(x, w, b, strides=(1, 1), padding="SAME"):
    out = jax.lax.conv_general_dilated(
        x, w, window_strides=strides, padding=padding,
        dimension_numbers=("NHWC", "HWIO", "NHWC"))
    return out + b


def encoder_block_2d_ref(x_nchw, params, groups, eps=1e-6):
    x = jnp.transpose(x_nchw, (0, 2, 3, 1)).astype(jnp.float32)
    for p in params["blocks"]:
        res = x
        h = _ref_gn_silu(x, p["norm1_gamma"], p["norm1_beta"], groups, eps)
        h = _ref_conv(h, p["conv1_w"], p["conv1_b"])
        h = _ref_gn_silu(h, p["norm2_gamma"], p["norm2_beta"], groups, eps)
        if "id_w" in p:
            res = _ref_conv(res, p["id_w"], p["id_b"])
        x = _ref_conv(h, p["conv2_w"], p["conv2_b"]) + res
    # torch Conv2d(k=3, stride=2, padding=1) == explicit ((1,1),(1,1)) padding.
    x = _ref_conv(x, params["down_w"], params["down_b"],
                  strides=(2, 2), padding=((1, 1), (1, 1)))
    return jnp.transpose(x, (0, 3, 1, 2))


# ------------------------------------ main --------------------------------------


if __name__ == "__main__":
    B, Cin, Cout, H, W = 2, 8, 16, 16, 16
    groups = 4                       # must divide both Cin and Cout
    num_blocks = 2

    key = jax.random.PRNGKey(0)
    kx_, kp = jax.random.split(key)
    x = jax.random.normal(kx_, (B, Cin, H, W), jnp.float32)
    params = init_params(kp, Cin, Cout, num_blocks)

    out = jax.block_until_ready(encoder_block_2d(x, params, groups))
    assert out.shape == (B, Cout, H // 2, W // 2), out.shape

    ref = jax.block_until_ready(encoder_block_2d_ref(x, params, groups))
    max_err = float(jnp.max(jnp.abs(out - ref)))
    # bf16 MXU operands + bf16 inter-kernel activations (f32 accumulation)
    # against an f32 reference -> loosened tolerance.
    assert jnp.allclose(out, ref, rtol=5e-2, atol=5e-2), max_err
    print("KERNEL_OK")
</pallas_src>

<mosaic_0001>
module attributes {stable_mosaic.version = 11 : i64} {
  func.func @gn_stats_kernel(%arg0: i32, %arg1: i32, %arg2: memref<1x16x16x8xbf16, #tpu.memory_space<vmem>>, %arg3: memref<1x1x1x8xf32, #tpu.memory_space<vmem>>, %arg4: memref<1x1x1x8xf32, #tpu.memory_space<vmem>>) attributes {dimension_semantics = [#tpu.dimension_semantics<parallel>, #tpu.dimension_semantics<parallel>], iteration_bounds = array<i64: 2, 1>, scalar_prefetch = 0 : i64, scratch_operands = 0 : i64, tpu.core_type = #tpu.core_type<tc>, window_params = [{transform_indices = @transform_0, window_bounds = array<i64: 1, 16, 16, 8>}, {transform_indices = @transform_1, window_bounds = array<i64: 1, 1, 1, 8>}, {transform_indices = @transform_2, window_bounds = array<i64: 1, 1, 1, 8>}]} {
    %c0 = arith.constant 0 : index
    %c0_0 = arith.constant 0 : index
    %c0_1 = arith.constant 0 : index
    %c0_2 = arith.constant 0 : index
    %0 = vector.load %arg2[%c0, %c0_0, %c0_1, %c0_2] : memref<1x16x16x8xbf16, #tpu.memory_space<vmem>>, vector<1x16x16x8xbf16>
    %1 = vector.shape_cast %0 : vector<1x16x16x8xbf16> to vector<16x16x8xbf16>
    %2 = arith.extf %1 : vector<16x16x8xbf16> to vector<16x16x8xf32>
    %cst = arith.constant dense<0.000000e+00> : vector<16x8xf32>
    %3 = vector.multi_reduction <add>, %2, %cst [0] : vector<16x16x8xf32> to vector<16x8xf32>
    %cst_3 = arith.constant dense<0.000000e+00> : vector<8xf32>
    %4 = vector.multi_reduction <add>, %3, %cst_3 [0] : vector<16x8xf32> to vector<8xf32>
    %5 = vector.shape_cast %4 : vector<8xf32> to vector<1x8xf32>
    %6 = arith.mulf %2, %2 : vector<16x16x8xf32>
    %cst_4 = arith.constant dense<0.000000e+00> : vector<16x8xf32>
    %7 = vector.multi_reduction <add>, %6, %cst_4 [0] : vector<16x16x8xf32> to vector<16x8xf32>
    %cst_5 = arith.constant dense<0.000000e+00> : vector<8xf32>
    %8 = vector.multi_reduction <add>, %7, %cst_5 [0] : vector<16x8xf32> to vector<8xf32>
    %9 = vector.shape_cast %8 : vector<8xf32> to vector<1x8xf32>
    %c0_6 = arith.constant 0 : index
    %c0_7 = arith.constant 0 : index
    %c0_8 = arith.constant 0 : index
    %c0_9 = arith.constant 0 : index
    %10 = vector.load %arg3[%c0_6, %c0_7, %c0_8, %c0_9] : memref<1x1x1x8xf32, #tpu.memory_space<vmem>>, vector<1x1x1x8xf32>
    %11 = vector.shape_cast %10 : vector<1x1x1x8xf32> to vector<1x8xf32>
    %12 = vector.shape_cast %5 : vector<1x8xf32> to vector<1x1x1x8xf32>
    tpu.vector_store %arg3[%c0_6, %c0_7, %c0_8, %c0_9], %12 {strides = array<i32>} : memref<1x1x1x8xf32, #tpu.memory_space<vmem>>, vector<1x1x1x8xf32>,
    %c0_10 = arith.constant 0 : index
    %c0_11 = arith.constant 0 : index
    %c0_12 = arith.constant 0 : index
    %c0_13 = arith.constant 0 : index
    %13 = vector.load %arg4[%c0_10, %c0_11, %c0_12, %c0_13] : memref<1x1x1x8xf32, #tpu.memory_space<vmem>>, vector<1x1x1x8xf32>
    %14 = vector.shape_cast %13 : vector<1x1x1x8xf32> to vector<1x8xf32>
    %15 = vector.shape_cast %9 : vector<1x8xf32> to vector<1x1x1x8xf32>
    tpu.vector_store %arg4[%c0_10, %c0_11, %c0_12, %c0_13], %15 {strides = array<i32>} : memref<1x1x1x8xf32, #tpu.memory_space<vmem>>, vector<1x1x1x8xf32>,
    return
  }
  func.func @transform_0(%arg0: i32, %arg1: i32) -> (i32, i32, i32, i32) {
    %c0_i32 = arith.constant 0 : i32
    %c0_i32_0 = arith.constant 0 : i32
    %c0_i32_1 = arith.constant 0 : i32
    return %arg0, %arg1, %c0_i32, %c0_i32_0 : i32, i32, i32, i32
  }
  func.func @transform_1(%arg0: i32, %arg1: i32) -> (i32, i32, i32, i32) {
    %c0_i32 = arith.constant 0 : i32
    %c0_i32_0 = arith.constant 0 : i32
    %c0_i32_1 = arith.constant 0 : i32
    return %arg0, %arg1, %c0_i32, %c0_i32_0 : i32, i32, i32, i32
  }
  func.func @transform_2(%arg0: i32, %arg1: i32) -> (i32, i32, i32, i32) {
    %c0_i32 = arith.constant 0 : i32
    %c0_i32_0 = arith.constant 0 : i32
    %c0_i32_1 = arith.constant 0 : i32
    return %arg0, %arg1, %c0_i32, %c0_i32_0 : i32, i32, i32, i32
  }
}

</mosaic_0001>

<llo_original>
// kernel: tpu_custom_call.1
$region0: #{tpu_custom_call.1}
  #allocation0 [shape = 'u32[]', space=smem, size = 0x4, offset = 0x4, fixed_abs, tag = 'smem constant byte address 0x4 - core index']
  #allocation1 [shape = 'u32[144,128]{1,0:T(1,128)}', space=vmem, size = 0x12000, scoped, tag = 'internal scratch']
  %s0 = inlined_call_operand.vmem [shape: bf16[2,16,16,8], index: 0, kind: input, shape index: {}]
  %s1 = inlined_call_operand.hbm [shape: f32[2,1,1,8], index: 1, kind: output, shape index: {0}]
  %s2 = inlined_call_operand.hbm [shape: f32[2,1,1,8], index: 2, kind: output, shape index: {1}]
  %3 = xla_tuple %s1, %s2
  %s4 = sld [smem:[#allocation0]]
  $region45: #{tpu_custom_call.1} parent=0
    _
  %s6 = ssub.s32 1, %s4
  %s7 = scalar_select 0, %s6, %s4
  $region1: #{tpu_custom_call.1} parent=0
    #allocation2 [shape = 'u8[1024]{0}', space=vmem, size = 0x400, scoped, tag = 'output window, operand 0']
    #allocation3 [shape = 's32[2]{0}', space=sflag, size = 0x8, scoped, tag = 'scoped memory for tpu_custom_call.1']
    #allocation4 [shape = 'u8[1024]{0}', space=vmem, size = 0x400, scoped, tag = 'output window, operand 1']
    #allocation5 [shape = 's32[2]{0}', space=sflag, size = 0x8, scoped, tag = 'scoped memory for tpu_custom_call.1']
    %8 = vsyncpa [#allocation3], 0
    %s9 = scalar_lea.sflag [#allocation3], 1
    %10 = vsyncpa %s9, 0
    %11 = vsyncpa [#allocation5], 0
    %s12 = scalar_lea.sflag [#allocation5], 1
    %13 = vsyncpa %s12, 0
    loop: start=0, step=1, limit=4
    $region2: #{tpu_custom_call.1} parent=1 // loop_pre_header
      _
    $region3: #{tpu_custom_call.1} parent=1 // loop_header
      %s15 = sphi 0, %s19
      %p16 = scmp.ge.s32.totalorder %s15, 4
      %s22 = sphi 0, %s34
      %s23 = sphi 0, %s30
      %s24 = sphi 0, %s22
      %s25 = sphi 0, %s23
      %s26 = sphi 0, %s24
      %s27 = sphi 0, %s25
      %s39 = sphi 0, %s41
      %s42 = sphi 0, %s39
      %s43 = sphi 0, %s42
      %s59 = sphi 0, %s43
      %s67 = sphi 0, %s69
      %s70 = sphi 0, %s67
      %s71 = sphi 0, %s70
      %s87 = sphi 0, %s71
      %s95 = sphi 0, %s97
      %s98 = sphi 0, %s95
      %s99 = sphi 0, %s98
      %s115 = sphi 0, %s99
    $region4: #{tpu_custom_call.1} parent=1 // loop_header_branch
      %18 = sbr.rel (%p16) target = $region8
    $region5: #{tpu_custom_call.1} parent=1 // loop_body
      %s20 = ssub.s32 %s15, 1
      %s21 = ssub.s32 %s15, 2
      %s28 = sadd.s32 1, %s23
      %p29 = scmp.ge.s32.totalorder %s28, 1
      %s30 = scalar_select %p29, 0, %s28
      %s31 = sadd.s32 1, %s22
      %s32 = scalar_select %p29, %s31, %s22
      %p33 = scmp.ge.s32.totalorder %s32, 2
      %s34 = scalar_select %p33, 0, %s32
      %s35 = ssub.s32 %s22, %s34
      %s36 = ssub.s32 %s23, %s30
      %s37 = sor.u32 %s35, %s36
      %p38 = scmp.eq.s32.totalorder %s37, 0
      %s40 = sadd.s32 %s39, 1
      %s41 = scalar_select %p38, %s39, %s40
      %p44 = pneg %p38
      %p45 = scmp.eq.s32.totalorder %s15, 1
      %p46 = por %p44, %p45
      %p47 = scmp.ne.s32.totalorder %s39, %s42
      %p48 = scmp.eq.s32.totalorder %s15, 0
      %p49 = por %p47, %p48
      %p50 = scmp.ne.s32.totalorder %s39, %s42
      %p51 = scmp.eq.s32.totalorder %s20, 1
      %p52 = por %p50, %p51
      %p53 = scmp.ne.s32.totalorder %s42, %s43
      %p54 = scmp.eq.s32.totalorder %s20, 0
      %p55 = por %p53, %p54
      %p56 = scmp.ne.s32.totalorder %s42, %s43
      %p57 = scmp.eq.s32.totalorder %s21, 1
      %p58 = por %p56, %p57
      %p60 = scmp.ne.s32.totalorder %s43, %s59
      %p61 = scmp.eq.s32.totalorder %s21, 0
      %p62 = por %p60, %p61
      %s63 = ssub.s32 %s22, %s34
      %s64 = ssub.s32 %s23, %s30
      %s65 = sor.u32 %s63, %s64
      %p66 = scmp.eq.s32.totalorder %s65, 0
      %s68 = sadd.s32 %s67, 1
      %s69 = scalar_select %p66, %s67, %s68
      %p72 = pneg %p66
      %p73 = scmp.eq.s32.totalorder %s15, 1
      %p74 = por %p72, %p73
      %p75 = scmp.ne.s32.totalorder %s67, %s70
      %p76 = scmp.eq.s32.totalorder %s15, 0
      %p77 = por %p75, %p76
      %p78 = scmp.ne.s32.totalorder %s67, %s70
      %p79 = scmp.eq.s32.totalorder %s20, 1
      %p80 = por %p78, %p79
      %p81 = scmp.ne.s32.totalorder %s70, %s71
      %p82 = scmp.eq.s32.totalorder %s20, 0
      %p83 = por %p81, %p82
      %p84 = scmp.ne.s32.totalorder %s70, %s71
      %p85 = scmp.eq.s32.totalorder %s21, 1
      %p86 = por %p84, %p85
      %p88 = scmp.ne.s32.totalorder %s71, %s87
      %p89 = scmp.eq.s32.totalorder %s21, 0
      %p90 = por %p88, %p89
      %s91 = ssub.s32 %s22, %s34
      %s92 = ssub.s32 %s23, %s30
      %s93 = sor.u32 %s91, %s92
      %p94 = scmp.eq.s32.totalorder %s93, 0
      %s96 = sadd.s32 %s95, 1
      %s97 = scalar_select %p94, %s95, %s96
      %p100 = pneg %p94
      %p101 = scmp.eq.s32.totalorder %s15, 1
      %p102 = por %p100, %p101
      %p103 = scmp.ne.s32.totalorder %s95, %s98
      %p104 = scmp.eq.s32.totalorder %s15, 0
      %p105 = por %p103, %p104
      %p106 = scmp.ne.s32.totalorder %s95, %s98
      %p107 = scmp.eq.s32.totalorder %s20, 1
      %p108 = por %p106, %p107
      %p109 = scmp.ne.s32.totalorder %s98, %s99
      %p110 = scmp.eq.s32.totalorder %s20, 0
      %p111 = por %p109, %p110
      %p112 = scmp.ne.s32.totalorder %s98, %s99
      %p113 = scmp.eq.s32.totalorder %s21, 1
      %p114 = por %p112, %p113
      %p116 = scmp.ne.s32.totalorder %s99, %s115
      %p117 = scmp.eq.s32.totalorder %s21, 0
      %p118 = por %p116, %p117
      %p119 = scmp.le.s32.totalorder 1, %s15
      %p120 = scmp.lt.s32.totalorder %s15, 3
      %p121 = pnand %p119, %p120
      %p122 = pneg %p121
      // Predicated region
      $region9: #{tpu_custom_call.1} parent=5 // pred_check
        _
      $region10: #{tpu_custom_call.1} parent=5 // pred_check_branch
        %124 = sbr.rel (%p121) target = $region12
      $region11: #{tpu_custom_call.1} parent=5 // pred_region
        %s125 = ssub.s32 %s15, 1
      $region12: #{tpu_custom_call.1} parent=5 // pred_fallthru
        _
      %p126 = scmp.lt.s32.totalorder %s15, 2
      // Predicated region
      $region13: #{tpu_custom_call.1} parent=5 // pred_check
        %p127 = pneg %p126
      $region14: #{tpu_custom_call.1} parent=5 // pred_check_branch
        %129 = sbr.rel (%p127) target = $region16
      $region15: #{tpu_custom_call.1} parent=5 // pred_region
        // Predicated region
        $region17: #{tpu_custom_call.1} parent=15 // pred_check
          %p130 = pneg %p49
        $region18: #{tpu_custom_call.1} parent=15 // pred_check_branch
          %132 = sbr.rel (%p130) target = $region20
        $region19: #{tpu_custom_call.1} parent=15 // pred_region
          %s133 = smul.u32 16, %s23
          %p134 = scmp.lt.s32.totalorder %s22, 1
          %s135 = scalar_select %p134, %s22, 1
          %p136 = scmp.lt.s32.totalorder %s133, 15
          %s137 = scalar_select %p136, %s133, 15
          %s138 = smul.addr %s137, 2
          %s139 = smul.addr %s135, 32
          %s140 = sadd.s32 %s138, %s139
          %s141 = smul.addr %s140, 4
          %s142 = scalar_lea.vmem %s0, %s141
          %s143 = smul.u32 16, %s23
        $region20: #{tpu_custom_call.1} parent=15 // pred_fallthru
          _
      $region16: #{tpu_custom_call.1} parent=5 // pred_fallthru
        _
      %p144 = scmp.le.s32.totalorder 1, %s15
      %p145 = scmp.lt.s32.totalorder %s15, 3
      %p146 = pnand %p144, %p145
      %p147 = pneg %p146
      // Predicated region
      $region21: #{tpu_custom_call.1} parent=5 // pred_check
        _
      $region22: #{tpu_custom_call.1} parent=5 // pred_check_branch
        %149 = sbr.rel (%p146) target = $region24
      $region23: #{tpu_custom_call.1} parent=5 // pred_region
        %s150 = ssub.s32 %s15, 1
        %s151 = smul.u32 16, %s25
        %p152 = scmp.lt.s32.totalorder %s24, 1
        %s153 = scalar_select %p152, %s24, 1
        %p154 = scmp.lt.s32.totalorder %s151, 15
        %s155 = scalar_select %p154, %s151, 15
        %s156 = smul.addr %s155, 2
        %s157 = smul.addr %s153, 32
        %s158 = sadd.s32 %s156, %s157
        %s159 = smul.addr %s158, 4
        %s160 = scalar_lea.vmem %s0, %s159
        %p161 = pneg %p55
        %p162 = pneg %p52
        %p163 = pneg %p83
        %p164 = pneg %p80
        %s165 = sand.u32 %s70, 1
        %s166 = scalar_lea.sflag [#allocation3], %s165
        %s167 = sand.u32 %s70, 1
        %s168 = scalar_lea.vmem [#allocation2], %s167
        %p169 = pneg %p111
        %p170 = pneg %p108
        %s171 = sand.u32 %s98, 1
        %s172 = scalar_lea.sflag [#allocation5], %s171
        %s173 = sand.u32 %s98, 1
        %s174 = scalar_lea.vmem [#allocation4], %s173
        %s175 = smul.u32 16, %s25
        %p176 = scmp.lt.s32.totalorder %s24, 1
        %s177 = scalar_select %p176, %s24, 1
        %p178 = scmp.lt.s32.totalorder %s175, 15
        %s179 = scalar_select %p178, %s175, 15
        %s180 = smul.addr %s179, 2
        %s181 = smul.addr %s177, 32
        %s182 = sadd.s32 %s180, %s181
        %s183 = smul.addr %s182, 4
        %s184 = scalar_lea.vmem %s0, %s183
        %s185 = smul.u32 16, %s25
        %v186 = vld [vmem:[%s184] sm:$0xf]
        %v187 = vld [vmem:[%s184 + $0x4] sm:$0xf]
        %v188 = vld [vmem:[%s184 + $0x8] sm:$0xf]
        %v189 = vld [vmem:[%s184 + $0xc] sm:$0xf]
        %v190 = vld [vmem:[%s184 + $0x10] sm:$0xf]
        %v191 = vld [vmem:[%s184 + $0x14] sm:$0xf]
        %v192 = vld [vmem:[%s184 + $0x18] sm:$0xf]
        %v193 = vld [vmem:[%s184 + $0x1c] sm:$0xf]
        %v194 = vld [vmem:[%s184 + $0x20] sm:$0xf]
        %v195 = vld [vmem:[%s184 + $0x24] sm:$0xf]
        %v196 = vld [vmem:[%s184 + $0x28] sm:$0xf]
        %v197 = vld [vmem:[%s184 + $0x2c] sm:$0xf]
        %v198 = vld [vmem:[%s184 + $0x30] sm:$0xf]
        %v199 = vld [vmem:[%s184 + $0x34] sm:$0xf]
        %v200 = vld [vmem:[%s184 + $0x38] sm:$0xf]
        %v201 = vld [vmem:[%s184 + $0x3c] sm:$0xf]
        %v202 = vld [vmem:[%s184 + $0x40] sm:$0xf]
        %v203 = vld [vmem:[%s184 + $0x44] sm:$0xf]
        %v204 = vld [vmem:[%s184 + $0x48] sm:$0xf]
        %v205 = vld [vmem:[%s184 + $0x4c] sm:$0xf]
        %v206 = vld [vmem:[%s184 + $0x50] sm:$0xf]
        %v207 = vld [vmem:[%s184 + $0x54] sm:$0xf]
        %v208 = vld [vmem:[%s184 + $0x58] sm:$0xf]
        %v209 = vld [vmem:[%s184 + $0x5c] sm:$0xf]
        %v210 = vld [vmem:[%s184 + $0x60] sm:$0xf]
        %v211 = vld [vmem:[%s184 + $0x64] sm:$0xf]
        %v212 = vld [vmem:[%s184 + $0x68] sm:$0xf]
        %v213 = vld [vmem:[%s184 + $0x6c] sm:$0xf]
        %v214 = vld [vmem:[%s184 + $0x70] sm:$0xf]
        %v215 = vld [vmem:[%s184 + $0x74] sm:$0xf]
        %v216 = vld [vmem:[%s184 + $0x78] sm:$0xf]
        %v217 = vld [vmem:[%s184 + $0x7c] sm:$0xf]
        %v218 = vunpack.c.l.bf16 %v186
        %v219 = vunpack.c.l.bf16 %v187
        %v220 = vunpack.c.l.bf16 %v188
        %v221 = vunpack.c.l.bf16 %v189
        %v222 = vunpack.c.l.bf16 %v190
        %v223 = vunpack.c.l.bf16 %v191
        %v224 = vunpack.c.l.bf16 %v192
        %v225 = vunpack.c.l.bf16 %v193
        %v226 = vunpack.c.l.bf16 %v194
        %v227 = vunpack.c.l.bf16 %v195
        %v228 = vunpack.c.l.bf16 %v196
        %v229 = vunpack.c.l.bf16 %v197
        %v230 = vunpack.c.l.bf16 %v198
        %v231 = vunpack.c.l.bf16 %v199
        %v232 = vunpack.c.l.bf16 %v200
        %v233 = vunpack.c.l.bf16 %v201
        %v234 = vunpack.c.l.bf16 %v202
        %v235 = vunpack.c.l.bf16 %v203
        %v236 = vunpack.c.l.bf16 %v204
        %v237 = vunpack.c.l.bf16 %v205
        %v238 = vunpack.c.l.bf16 %v206
        %v239 = vunpack.c.l.bf16 %v207
        %v240 = vunpack.c.l.bf16 %v208
        %v241 = vunpack.c.l.bf16 %v209
        %v242 = vunpack.c.l.bf16 %v210
        %v243 = vunpack.c.l.bf16 %v211
        %v244 = vunpack.c.l.bf16 %v212
        %v245 = vunpack.c.l.bf16 %v213
        %v246 = vunpack.c.l.bf16 %v214
        %v247 = vunpack.c.l.bf16 %v215
        %v248 = vunpack.c.l.bf16 %v216
        %v249 = vunpack.c.l.bf16 %v217
        %vm250 = vcmask 64512
        %v251 = vsel %vm250, %v218, 0.0
        %v252 = vsel %vm250, %v220, 0.0
        %v253 = vadd.f32 %v251, %v252
        %v254 = vsel %vm250, %v222, 0.0
        %v255 = vadd.f32 %v253, %v254
        %v256 = vsel %vm250, %v224, 0.0
        %v257 = vadd.f32 %v255, %v256
        %v258 = vsel %vm250, %v226, 0.0
        %v259 = vadd.f32 %v257, %v258
        %v260 = vsel %vm250, %v228, 0.0
        %v261 = vadd.f32 %v259, %v260
        %v262 = vsel %vm250, %v230, 0.0
        %v263 = vadd.f32 %v261, %v262
        %v264 = vsel %vm250, %v232, 0.0
        %v265 = vadd.f32 %v263, %v264
        %v266 = vsel %vm250, %v234, 0.0
        %v267 = vadd.f32 %v265, %v266
        %v268 = vsel %vm250, %v236, 0.0
        %v269 = vadd.f32 %v267, %v268
        %v270 = vsel %vm250, %v238, 0.0
        %v271 = vadd.f32 %v269, %v270
        %v272 = vsel %vm250, %v240, 0.0
        %v273 = vadd.f32 %v271, %v272
        %v274 = vsel %vm250, %v242, 0.0
        %v275 = vadd.f32 %v273, %v274
        %v276 = vsel %vm250, %v244, 0.0
        %v277 = vadd.f32 %v275, %v276
        %v278 = vsel %vm250, %v246, 0.0
        %v279 = vadd.f32 %v277, %v278
        %v280 = vsel %vm250, %v248, 0.0
        %v281 = vadd.f32 %v279, %v280
        %v282 = vsel %vm250, %v219, 0.0
        %v283 = vsel %vm250, %v221, 0.0
        %v284 = vadd.f32 %v282, %v283
        %v285 = vsel %vm250, %v223, 0.0
        %v286 = vadd.f32 %v284, %v285
        %v287 = vsel %vm250, %v225, 0.0
        %v288 = vadd.f32 %v286, %v287
        %v289 = vsel %vm250, %v227, 0.0
        %v290 = vadd.f32 %v288, %v289
        %v291 = vsel %vm250, %v229, 0.0
        %v292 = vadd.f32 %v290, %v291
        %v293 = vsel %vm250, %v231, 0.0
        %v294 = vadd.f32 %v292, %v293
        %v295 = vsel %vm250, %v233, 0.0
        %v296 = vadd.f32 %v294, %v295
        %v297 = vsel %vm250, %v235, 0.0
        %v298 = vadd.f32 %v296, %v297
        %v299 = vsel %vm250, %v237, 0.0
        %v300 = vadd.f32 %v298, %v299
        %v301 = vsel %vm250, %v239, 0.0
        %v302 = vadd.f32 %v300, %v301
        %v303 = vsel %vm250, %v241, 0.0
        %v304 = vadd.f32 %v302, %v303
        %v305 = vsel %vm250, %v243, 0.0
        %v306 = vadd.f32 %v304, %v305
        %v307 = vsel %vm250, %v245, 0.0
        %v308 = vadd.f32 %v306, %v307
        %v309 = vsel %vm250, %v247, 0.0
        %v310 = vadd.f32 %v308, %v309
        %v311 = vsel %vm250, %v249, 0.0
        %v312 = vadd.f32 %v310, %v311
        %v313 = vsel %vm250, %v281, 0.0
        %v314 = vsel %vm250, %v312, 0.0
        %v315 = vadd.f32 %v313, %v314
        %v316 = vrot.slane %v315, 4
        %v317 = vadd.f32 %v315, %v316
        %v318 = vrot.slane %v317, 2
        %v319 = vadd.f32 %v317, %v318
        %v320 = vrot.slane %v319, 1
        %v321 = vadd.f32 %v319, %v320
        %v322 = vmul.f32 %v218, %v218
        %v323 = vmul.f32 %v219, %v219
        %v324 = vmul.f32 %v220, %v220
        %v325 = vmul.f32 %v221, %v221
        %v326 = vmul.f32 %v222, %v222
        %v327 = vmul.f32 %v223, %v223
        %v328 = vmul.f32 %v224, %v224
        %v329 = vmul.f32 %v225, %v225
        %v330 = vmul.f32 %v226, %v226
        %v331 = vmul.f32 %v227, %v227
        %v332 = vmul.f32 %v228, %v228
        %v333 = vmul.f32 %v229, %v229
        %v334 = vmul.f32 %v230, %v230
        %v335 = vmul.f32 %v231, %v231
        %v336 = vmul.f32 %v232, %v232
        %v337 = vmul.f32 %v233, %v233
        %v338 = vmul.f32 %v234, %v234
        %v339 = vmul.f32 %v235, %v235
        %v340 = vmul.f32 %v236, %v236
        %v341 = vmul.f32 %v237, %v237
        %v342 = vmul.f32 %v238, %v238
        %v343 = vmul.f32 %v239, %v239
        %v344 = vmul.f32 %v240, %v240
        %v345 = vmul.f32 %v241, %v241
        %v346 = vmul.f32 %v242, %v242
        %v347 = vmul.f32 %v243, %v243
        %v348 = vmul.f32 %v244, %v244
        %v349 = vmul.f32 %v245, %v245
        %v350 = vmul.f32 %v246, %v246
        %v351 = vmul.f32 %v247, %v247
        %v352 = vmul.f32 %v248, %v248
        %v353 = vmul.f32 %v249, %v249
        %v354 = vsel %vm250, %v322, 0.0
        %v355 = vsel %vm250, %v324, 0.0
        %v356 = vadd.f32 %v354, %v355
        %v357 = vsel %vm250, %v326, 0.0
        %v358 = vadd.f32 %v356, %v357
        %v359 = vsel %vm250, %v328, 0.0
        %v360 = vadd.f32 %v358, %v359
        %v361 = vsel %vm250, %v330, 0.0
        %v362 = vadd.f32 %v360, %v361
        %v363 = vsel %vm250, %v332, 0.0
        %v364 = vadd.f32 %v362, %v363
        %v365 = vsel %vm250, %v334, 0.0
        %v366 = vadd.f32 %v364, %v365
        %v367 = vsel %vm250, %v336, 0.0
        %v368 = vadd.f32 %v366, %v367
        %v369 = vsel %vm250, %v338, 0.0
        %v370 = vadd.f32 %v368, %v369
        %v371 = vsel %vm250, %v340, 0.0
        %v372 = vadd.f32 %v370, %v371
        %v373 = vsel %vm250, %v342, 0.0
        %v374 = vadd.f32 %v372, %v373
        %v375 = vsel %vm250, %v344, 0.0
        %v376 = vadd.f32 %v374, %v375
        %v377 = vsel %vm250, %v346, 0.0
        %v378 = vadd.f32 %v376, %v377
        %v379 = vsel %vm250, %v348, 0.0
        %v380 = vadd.f32 %v378, %v379
        %v381 = vsel %vm250, %v350, 0.0
        %v382 = vadd.f32 %v380, %v381
        %v383 = vsel %vm250, %v352, 0.0
        %v384 = vadd.f32 %v382, %v383
        %v385 = vsel %vm250, %v323, 0.0
        %v386 = vsel %vm250, %v325, 0.0
        %v387 = vadd.f32 %v385, %v386
        %v388 = vsel %vm250, %v327, 0.0
        %v389 = vadd.f32 %v387, %v388
        %v390 = vsel %vm250, %v329, 0.0
        %v391 = vadd.f32 %v389, %v390
        %v392 = vsel %vm250, %v331, 0.0
        %v393 = vadd.f32 %v391, %v392
        %v394 = vsel %vm250, %v333, 0.0
        %v395 = vadd.f32 %v393, %v394
        %v396 = vsel %vm250, %v335, 0.0
        %v397 = vadd.f32 %v395, %v396
        %v398 = vsel %vm250, %v337, 0.0
        %v399 = vadd.f32 %v397, %v398
        %v400 = vsel %vm250, %v339, 0.0
        %v401 = vadd.f32 %v399, %v400
        %v402 = vsel %vm250, %v341, 0.0
        %v403 = vadd.f32 %v401, %v402
        %v404 = vsel %vm250, %v343, 0.0
        %v405 = vadd.f32 %v403, %v404
        %v406 = vsel %vm250, %v345, 0.0
        %v407 = vadd.f32 %v405, %v406
        %v408 = vsel %vm250, %v347, 0.0
        %v409 = vadd.f32 %v407, %v408
        %v410 = vsel %vm250, %v349, 0.0
        %v411 = vadd.f32 %v409, %v410
        %v412 = vsel %vm250, %v351, 0.0
        %v413 = vadd.f32 %v411, %v412
        %v414 = vsel %vm250, %v353, 0.0
        %v415 = vadd.f32 %v413, %v414
        %v416 = vsel %vm250, %v384, 0.0
        %v417 = vsel %vm250, %v415, 0.0
        %v418 = vadd.f32 %v416, %v417
        %v419 = vrot.slane %v418, 4
        %v420 = vadd.f32 %v418, %v419
        %v421 = vrot.slane %v420, 2
        %v422 = vadd.f32 %v420, %v421
        %v423 = vrot.slane %v422, 1
        %v424 = vadd.f32 %v422, %v423
        %vm425 = vcmask 57344
        %426 = vst.msk [vmem:[%s168] sm:$0x1] %vm425, %v321
        %427 = vst.msk [vmem:[%s174] sm:$0x1] %vm425, %v424
        %s428 = sand.u32 %s70, 1
        %s429 = scalar_lea.sflag [#allocation3], %s428
        %s430 = sand.u32 %s70, 1
        %s431 = scalar_lea.vmem [#allocation2], %s430
        %s432 = sand.u32 %s98, 1
        %s433 = scalar_lea.sflag [#allocation5], %s432
        %s434 = sand.u32 %s98, 1
        %s435 = scalar_lea.vmem [#allocation4], %s434
        // Predicated region
        $region25: #{tpu_custom_call.1} parent=23 // pred_check
          %p436 = pneg %p80
        $region26: #{tpu_custom_call.1} parent=23 // pred_check_branch
          %438 = sbr.rel (%p436) target = $region28
        $region27: #{tpu_custom_call.1} parent=23 // pred_region
          %s440 = ssub.s32 16, 16
          %441 = vsyncadd %s429, %s440
          %s442 = sadd.s32 %s25, %s24
          %s443 = smul.addr %s442, 16
          %s444 = scalar_lea.hbm %s1, %s443
          %s446 = sshll.u32 %s431, 4
          %s447 = int_to_ptr.vmem [resolvable:$true] %s446
          %449 = dma.vmem_to_hbm [thread:$0]  %s447, 16, %s444, %s429
        $region28: #{tpu_custom_call.1} parent=23 // pred_fallthru
          _
        // Predicated region
        $region29: #{tpu_custom_call.1} parent=23 // pred_check
          %p450 = pneg %p108
        $region30: #{tpu_custom_call.1} parent=23 // pred_check_branch
          %452 = sbr.rel (%p450) target = $region32
        $region31: #{tpu_custom_call.1} parent=23 // pred_region
          %s454 = ssub.s32 16, 16
          %455 = vsyncadd %s433, %s454
          %s456 = sadd.s32 %s25, %s24
          %s457 = smul.addr %s456, 16
          %s458 = scalar_lea.hbm %s2, %s457
          %s460 = sshll.u32 %s435, 4
          %s461 = int_to_ptr.vmem [resolvable:$true] %s460
          %463 = dma.vmem_to_hbm [thread:$0]  %s461, 16, %s458, %s433
        $region32: #{tpu_custom_call.1} parent=23 // pred_fallthru
          _
      $region24: #{tpu_custom_call.1} parent=5 // pred_fallthru
        _
      %p464 = scmp.le.s32.totalorder 2, %s15
      // Predicated region
      $region33: #{tpu_custom_call.1} parent=5 // pred_check
        %p465 = pneg %p464
      $region34: #{tpu_custom_call.1} parent=5 // pred_check_branch
        %467 = sbr.rel (%p465) target = $region36
      $region35: #{tpu_custom_call.1} parent=5 // pred_region
        %s468 = ssub.s32 %s15, 2
        // Predicated region
        $region37: #{tpu_custom_call.1} parent=35 // pred_check
          %p469 = pneg %p86
        $region38: #{tpu_custom_call.1} parent=35 // pred_check_branch
          %471 = sbr.rel (%p469) target = $region40
        $region39: #{tpu_custom_call.1} parent=35 // pred_region
          %s472 = sand.u32 %s71, 1
          %s473 = scalar_lea.sflag [#allocation3], %s472
          %s474 = sand.u32 %s71, 1
          %s475 = scalar_lea.vmem [#allocation2], %s474
          %476 = dma.done %s473, 16
        $region40: #{tpu_custom_call.1} parent=35 // pred_fallthru
          _
        // Predicated region
        $region41: #{tpu_custom_call.1} parent=35 // pred_check
          %p477 = pneg %p114
        $region42: #{tpu_custom_call.1} parent=35 // pred_check_branch
          %479 = sbr.rel (%p477) target = $region44
        $region43: #{tpu_custom_call.1} parent=35 // pred_region
          %s480 = sand.u32 %s99, 1
          %s481 = scalar_lea.sflag [#allocation5], %s480
          %s482 = sand.u32 %s99, 1
          %s483 = scalar_lea.vmem [#allocation4], %s482
          %484 = dma.done %s481, 16
        $region44: #{tpu_custom_call.1} parent=35 // pred_fallthru
          _
      $region36: #{tpu_custom_call.1} parent=5 // pred_fallthru
        _
    $region6: #{tpu_custom_call.1} parent=1 // loop_footer
      %s19 = sadd.s32 1, %s15
    $region7: #{tpu_custom_call.1} parent=1 // loop_footer_branch
      %14 = sbr.rel target = $region3
    $region8: #{tpu_custom_call.1} parent=1 // loop_exit
      _
    %485 = vsyncpa [#allocation3], 1
    %s486 = scalar_lea.sflag [#allocation3], 1
    %487 = vsyncpa %s486, 1
    %488 = vsyncpa [#allocation5], 1
    %s489 = scalar_lea.sflag [#allocation5], 1
    %490 = vsyncpa %s489, 1

</llo_original>
